<compile_context>
chip_gen: v7x
topology: tpu7x:2x2x1
jax: 0.10.0
libtpu: 0.0.40
codegen_flags: <defaults>
</compile_context>

<pallas_src>
import functools

import numpy as np
import jax
import jax.numpy as jnp
from jax import lax
from jax.experimental import pallas as pl
from jax.experimental.pallas import tpu as pltpu


# --------------------------------------------------------------------------
# Constant per-axis interpolation matrices (cached; exact PyTorch semantics).
# --------------------------------------------------------------------------
@functools.lru_cache(maxsize=None)
def _upsample_matrix_np(n: int) -> np.ndarray:
    """U (2n, n) s.t. U @ v == F.interpolate(v, scale_factor=2, mode='bilinear',
    align_corners=False) along one axis (half-pixel centers, src clamped at 0,
    x1 clamped at n-1 -- PyTorch border semantics)."""
    m = np.zeros((2 * n, n), dtype=np.float32)
    for j in range(2 * n):
        src = max(j * 0.5 - 0.25, 0.0)
        x0 = int(np.floor(src))
        frac = src - x0
        x1 = min(x0 + 1, n - 1)
        m[j, x0] += 1.0 - frac
        m[j, x1] += frac
    return m


def _vmem_capacity_bytes() -> int:
    """Generation-aware VMEM capacity (128 MiB v5e/v6e, 64 MiB v7x per TC)."""
    try:
        info = pltpu.get_tpu_info()
        cap = getattr(info, "vmem_capacity_bytes", None)
        if cap:
            return int(cap)
    except Exception:
        pass
    return 64 << 20  # conservative fallback (v7x physical per-TensorCore)


# --------------------------------------------------------------------------
# Fused kernel: one grid step reconstructs one (H0, W0) image, coarse -> fine.
# --------------------------------------------------------------------------
def _make_kernel(num_levels: int, use_bf16: bool):
    L = num_levels

    def _dot(a, b):
        if use_bf16:
            # bf16 operands, f32 accumulation: native MXU rate on v5e/v6e/v7x.
            return jnp.dot(a.astype(jnp.bfloat16), b.astype(jnp.bfloat16),
                           preferred_element_type=jnp.float32)
        return jnp.dot(a, b, preferred_element_type=jnp.float32,
                       precision=lax.Precision.HIGHEST)

    def kernel(*refs):
        level_refs = refs[:L]                 # finest ... coarsest, each (H_l, W_l)
        mat_refs = refs[L:L + 2 * (L - 1)]    # (uh_0, uwT_0, uh_1, uwT_1, ...)
        o_ref = refs[-1]                      # (H_0, W_0)

        # Carried reconstruction stays in f32 on-chip; loop unrolled at trace
        # time (shapes differ per level).
        x = level_refs[L - 1][...].astype(jnp.float32)
        for s in range(L - 2, -1, -1):
            uh = mat_refs[2 * s][...]          # (H_s, H_{s+1})
            uwT = mat_refs[2 * s + 1][...]     # (W_{s+1}, W_s)
            rows = _dot(uh, x)                 # row upsample  -> (H_s, W_{s+1})
            # Residual add fused into the column-matmul epilogue.
            x = level_refs[s][...].astype(jnp.float32) + _dot(rows, uwT)
        o_ref[...] = x.astype(o_ref.dtype)

    return kernel


# --------------------------------------------------------------------------
# Wrapper: equivalent of ReconstructPyramid.forward(pyr).
# --------------------------------------------------------------------------
def reconstruct_pyramid(pyr, type="laplace", nlevels=None, use_bf16_matmul=True):
    if nlevels is None:
        nlevels = len(pyr)
    if type == "gauss":
        return pyr[0]
    if nlevels <= 1:
        return pyr[-1]

    # Levels the torch loop actually consumes: pyr[0..nlevels-2] and pyr[-1].
    levels = list(pyr[:nlevels - 1]) + [pyr[-1]]
    L = len(levels)

    N, C, H0, W0 = levels[0].shape
    NC = N * C
    heights = [int(p.shape[2]) for p in levels]
    widths = [int(p.shape[3]) for p in levels]
    for s in range(L - 1):
        assert heights[s] == 2 * heights[s + 1] and widths[s] == 2 * widths[s + 1], \
            "pyramid levels must halve in resolution"
    out_dtype = jnp.result_type(*[p.dtype for p in levels])
    mat_dtype = jnp.bfloat16 if use_bf16_matmul else jnp.float32

    # (N, C, H, W) -> (N*C, H, W): pure row-major reshape, no transpose needed.
    levels_3d = [p.reshape(NC, heights[l], widths[l]) for l, p in enumerate(levels)]

    # Per-axis interpolation constants (tiny: O(H^2)+O(W^2) per step, no kron).
    mats = []
    for s in range(L - 1):
        uh = _upsample_matrix_np(heights[s + 1])       # (H_s, H_{s+1})
        uwT = _upsample_matrix_np(widths[s + 1]).T     # (W_{s+1}, W_s)
        mats.append(jnp.asarray(uh, dtype=mat_dtype))
        mats.append(jnp.asarray(uwT, dtype=mat_dtype))

    # Block specs: per grid step one image per level (squeezed leading dim,
    # full spatial extents -> valid regardless of (8,128) divisibility).
    level_specs = [
        pl.BlockSpec((None, heights[l], widths[l]), lambda i: (i, 0, 0))
        for l in range(L)
    ]
    mat_specs = [pl.BlockSpec(m.shape, lambda i: (0, 0)) for m in mats]
    out_spec = pl.BlockSpec((None, H0, W0), lambda i: (i, 0, 0))

    # ---- VMEM budget: double-buffered blocks + in-kernel f32 temporaries ----
    lvl_block_bytes = sum(
        heights[l] * widths[l] * np.dtype(levels[l].dtype).itemsize for l in range(L))
    mat_bytes = sum(int(m.size) * np.dtype(mat_dtype).itemsize for m in mats)
    out_block_bytes = H0 * W0 * np.dtype(out_dtype).itemsize
    # Finest-step live temporaries: carried x (H0*W0), `rows` (H0*W0/2) and the
    # column-matmul result (H0*W0), all f32, live simultaneously.
    temp_bytes = int(2.5 * H0 * W0 * 4) + H0 * W0 * 4
    vmem_need = 2 * (lvl_block_bytes + mat_bytes + out_block_bytes) + temp_bytes + (2 << 20)
    cap = _vmem_capacity_bytes()
    vmem_limit = int(min(max(vmem_need, 16 << 20), int(cap * 0.9)))

    flops = 0
    for s in range(L - 1):
        flops += 2 * heights[s] * heights[s + 1] * widths[s + 1]   # row upsample
        flops += 2 * heights[s] * widths[s + 1] * widths[s]        # col upsample
        flops += heights[s] * widths[s]                            # residual add
    flops *= NC
    cost = pl.CostEstimate(
        flops=int(flops),
        transcendentals=0,
        bytes_accessed=int(NC * (lvl_block_bytes + out_block_bytes) + mat_bytes),
    )

    out3d = pl.pallas_call(
        _make_kernel(L, use_bf16_matmul),
        out_shape=jax.ShapeDtypeStruct((NC, H0, W0), out_dtype),
        grid_spec=pltpu.PrefetchScalarGridSpec(
            num_scalar_prefetch=0,
            grid=(NC,),                       # genuinely parallel grid axis
            in_specs=level_specs + mat_specs,
            out_specs=out_spec,
        ),
        compiler_params=pltpu.CompilerParams(
            dimension_semantics=("parallel",),
            vmem_limit_bytes=vmem_limit,
        ),
        cost_estimate=cost,
    )(*(levels_3d + mats))

    return out3d.reshape(N, C, H0, W0)


if __name__ == "__main__":
    # ReconstructPyramid('laplace', nlevels=3); no learnable parameters.
    nlevels = 3
    N, C, S = 2, 4, 16  # finest level is (2, 4, 16, 16)

    key = jax.random.PRNGKey(0)
    pyr = []
    for lvl in range(nlevels):
        key, sub = jax.random.split(key)
        size = S // (2 ** lvl)
        pyr.append(jax.random.normal(sub, (N, C, size, size), dtype=jnp.float32))

    out = jax.block_until_ready(reconstruct_pyramid(pyr, type="laplace", nlevels=nlevels))
    assert out.shape == (N, C, S, S)

    # Pure-numpy separable reference (PyTorch align_corners=False semantics).
    def _ref(levels):
        x = np.asarray(levels[-1], dtype=np.float32)
        for s in range(len(levels) - 2, -1, -1):
            h, w = x.shape[2], x.shape[3]
            uh = _upsample_matrix_np(h)
            uw = _upsample_matrix_np(w)
            x = np.einsum("rh,nchw->ncrw", uh, x)
            x = np.einsum("ncrw,sw->ncrs", x, uw)
            x = x + np.asarray(levels[s], dtype=np.float32)
        return x

    ref = _ref(pyr)

    # Default (bf16 MXU operands, f32 accumulation): loose tolerance from bf16.
    np.testing.assert_allclose(np.asarray(out), ref, rtol=3e-2, atol=3e-2)

    # f32 compute path: tight tolerance verifies layout/ordering plumbing.
    out_f32 = jax.block_until_ready(
        reconstruct_pyramid(pyr, type="laplace", nlevels=nlevels, use_bf16_matmul=False))
    np.testing.assert_allclose(np.asarray(out_f32), ref, rtol=1e-3, atol=1e-3)

    # Also exercise the trivial 'gauss' branch.
    out_g = jax.block_until_ready(reconstruct_pyramid(pyr, type="gauss", nlevels=nlevels))
    assert out_g.shape == pyr[0].shape

    print("KERNEL_OK")
</pallas_src>

<mosaic_0001>
module attributes {stable_mosaic.version = 11 : i64} {
  func.func @kernel(%arg0: i32, %arg1: memref<1x16x16xf32, #tpu.memory_space<vmem>>, %arg2: memref<1x8x8xf32, #tpu.memory_space<vmem>>, %arg3: memref<1x4x4xf32, #tpu.memory_space<vmem>>, %arg4: memref<16x8xbf16, #tpu.memory_space<vmem>>, %arg5: memref<8x16xbf16, #tpu.memory_space<vmem>>, %arg6: memref<8x4xbf16, #tpu.memory_space<vmem>>, %arg7: memref<4x8xbf16, #tpu.memory_space<vmem>>, %arg8: memref<1x16x16xf32, #tpu.memory_space<vmem>>) attributes {dimension_semantics = [#tpu.dimension_semantics<parallel>], iteration_bounds = array<i64: 8>, scalar_prefetch = 0 : i64, scratch_operands = 0 : i64, tpu.core_type = #tpu.core_type<tc>, window_params = [{transform_indices = @transform_0, window_bounds = array<i64: 1, 16, 16>}, {transform_indices = @transform_1, window_bounds = array<i64: 1, 8, 8>}, {transform_indices = @transform_2, window_bounds = array<i64: 1, 4, 4>}, {pipeline_mode = #tpu.pipeline_mode<synchronous>, transform_indices = @transform_3, window_bounds = array<i64: 16, 8>}, {pipeline_mode = #tpu.pipeline_mode<synchronous>, transform_indices = @transform_4, window_bounds = array<i64: 8, 16>}, {pipeline_mode = #tpu.pipeline_mode<synchronous>, transform_indices = @transform_5, window_bounds = array<i64: 8, 4>}, {pipeline_mode = #tpu.pipeline_mode<synchronous>, transform_indices = @transform_6, window_bounds = array<i64: 4, 8>}, {transform_indices = @transform_7, window_bounds = array<i64: 1, 16, 16>}]} {
    %c0 = arith.constant 0 : index
    %c0_0 = arith.constant 0 : index
    %c0_1 = arith.constant 0 : index
    %0 = vector.load %arg3[%c0, %c0_0, %c0_1] : memref<1x4x4xf32, #tpu.memory_space<vmem>>, vector<1x4x4xf32>
    %1 = vector.shape_cast %0 : vector<1x4x4xf32> to vector<4x4xf32>
    %c0_2 = arith.constant 0 : index
    %c0_3 = arith.constant 0 : index
    %2 = vector.load %arg6[%c0_2, %c0_3] : memref<8x4xbf16, #tpu.memory_space<vmem>>, vector<8x4xbf16>
    %c0_4 = arith.constant 0 : index
    %c0_5 = arith.constant 0 : index
    %3 = vector.load %arg7[%c0_4, %c0_5] : memref<4x8xbf16, #tpu.memory_space<vmem>>, vector<4x8xbf16>
    %4 = arith.truncf %1 : vector<4x4xf32> to vector<4x4xbf16>
    %cst = arith.constant dense<0.000000e+00> : vector<8x4xf32>
    %5 = tpu.matmul %2, %4, %cst {dimension_numbers = #tpu.dot_dimension_numbers<[1], [0], [0], [1], [0, 0, 1, 1], [], []>} : vector<8x4xbf16>, vector<4x4xbf16>, vector<8x4xf32> -> vector<8x4xf32>
    %c0_6 = arith.constant 0 : index
    %c0_7 = arith.constant 0 : index
    %c0_8 = arith.constant 0 : index
    %6 = vector.load %arg2[%c0_6, %c0_7, %c0_8] : memref<1x8x8xf32, #tpu.memory_space<vmem>>, vector<1x8x8xf32>
    %7 = vector.shape_cast %6 : vector<1x8x8xf32> to vector<8x8xf32>
    %8 = arith.truncf %5 : vector<8x4xf32> to vector<8x4xbf16>
    %cst_9 = arith.constant dense<0.000000e+00> : vector<8x8xf32>
    %9 = tpu.matmul %8, %3, %cst_9 {dimension_numbers = #tpu.dot_dimension_numbers<[1], [0], [0], [1], [0, 0, 1, 1], [], []>} : vector<8x4xbf16>, vector<4x8xbf16>, vector<8x8xf32> -> vector<8x8xf32>
    %10 = arith.addf %7, %9 : vector<8x8xf32>
    %c0_10 = arith.constant 0 : index
    %c0_11 = arith.constant 0 : index
    %11 = vector.load %arg4[%c0_10, %c0_11] : memref<16x8xbf16, #tpu.memory_space<vmem>>, vector<16x8xbf16>
    %c0_12 = arith.constant 0 : index
    %c0_13 = arith.constant 0 : index
    %12 = vector.load %arg5[%c0_12, %c0_13] : memref<8x16xbf16, #tpu.memory_space<vmem>>, vector<8x16xbf16>
    %13 = arith.truncf %10 : vector<8x8xf32> to vector<8x8xbf16>
    %cst_14 = arith.constant dense<0.000000e+00> : vector<16x8xf32>
    %14 = tpu.matmul %11, %13, %cst_14 {dimension_numbers = #tpu.dot_dimension_numbers<[1], [0], [0], [1], [0, 0, 1, 1], [], []>} : vector<16x8xbf16>, vector<8x8xbf16>, vector<16x8xf32> -> vector<16x8xf32>
    %c0_15 = arith.constant 0 : index
    %c0_16 = arith.constant 0 : index
    %c0_17 = arith.constant 0 : index
    %15 = vector.load %arg1[%c0_15, %c0_16, %c0_17] : memref<1x16x16xf32, #tpu.memory_space<vmem>>, vector<1x16x16xf32>
    %16 = vector.shape_cast %15 : vector<1x16x16xf32> to vector<16x16xf32>
    %17 = arith.truncf %14 : vector<16x8xf32> to vector<16x8xbf16>
    %cst_18 = arith.constant dense<0.000000e+00> : vector<16x16xf32>
    %18 = tpu.matmul %17, %12, %cst_18 {dimension_numbers = #tpu.dot_dimension_numbers<[1], [0], [0], [1], [0, 0, 1, 1], [], []>} : vector<16x8xbf16>, vector<8x16xbf16>, vector<16x16xf32> -> vector<16x16xf32>
    %19 = arith.addf %16, %18 : vector<16x16xf32>
    %c0_19 = arith.constant 0 : index
    %c0_20 = arith.constant 0 : index
    %c0_21 = arith.constant 0 : index
    %20 = vector.load %arg8[%c0_19, %c0_20, %c0_21] : memref<1x16x16xf32, #tpu.memory_space<vmem>>, vector<1x16x16xf32>
    %21 = vector.shape_cast %20 : vector<1x16x16xf32> to vector<16x16xf32>
    %22 = vector.shape_cast %19 : vector<16x16xf32> to vector<1x16x16xf32>
    tpu.vector_store %arg8[%c0_19, %c0_20, %c0_21], %22 {strides = array<i32>} : memref<1x16x16xf32, #tpu.memory_space<vmem>>, vector<1x16x16xf32>,
    return
  }
  func.func @transform_0(%arg0: i32) -> (i32, i32, i32) {
    %c0_i32 = arith.constant 0 : i32
    %c0_i32_0 = arith.constant 0 : i32
    %c0_i32_1 = arith.constant 0 : i32
    return %arg0, %c0_i32, %c0_i32_0 : i32, i32, i32
  }
  func.func @transform_1(%arg0: i32) -> (i32, i32, i32) {
    %c0_i32 = arith.constant 0 : i32
    %c0_i32_0 = arith.constant 0 : i32
    %c0_i32_1 = arith.constant 0 : i32
    return %arg0, %c0_i32, %c0_i32_0 : i32, i32, i32
  }
  func.func @transform_2(%arg0: i32) -> (i32, i32, i32) {
    %c0_i32 = arith.constant 0 : i32
    %c0_i32_0 = arith.constant 0 : i32
    %c0_i32_1 = arith.constant 0 : i32
    return %arg0, %c0_i32, %c0_i32_0 : i32, i32, i32
  }
  func.func @transform_3(%arg0: i32) -> (i32, i32) {
    %c0_i32 = arith.constant 0 : i32
    %c0_i32_0 = arith.constant 0 : i32
    %c0_i32_1 = arith.constant 0 : i32
    return %c0_i32, %c0_i32_0 : i32, i32
  }
  func.func @transform_4(%arg0: i32) -> (i32, i32) {
    %c0_i32 = arith.constant 0 : i32
    %c0_i32_0 = arith.constant 0 : i32
    %c0_i32_1 = arith.constant 0 : i32
    return %c0_i32, %c0_i32_0 : i32, i32
  }
  func.func @transform_5(%arg0: i32) -> (i32, i32) {
    %c0_i32 = arith.constant 0 : i32
    %c0_i32_0 = arith.constant 0 : i32
    %c0_i32_1 = arith.constant 0 : i32
    return %c0_i32, %c0_i32_0 : i32, i32
  }
  func.func @transform_6(%arg0: i32) -> (i32, i32) {
    %c0_i32 = arith.constant 0 : i32
    %c0_i32_0 = arith.constant 0 : i32
    %c0_i32_1 = arith.constant 0 : i32
    return %c0_i32, %c0_i32_0 : i32, i32
  }
  func.func @transform_7(%arg0: i32) -> (i32, i32, i32) {
    %c0_i32 = arith.constant 0 : i32
    %c0_i32_0 = arith.constant 0 : i32
    %c0_i32_1 = arith.constant 0 : i32
    return %arg0, %c0_i32, %c0_i32_0 : i32, i32, i32
  }
}

</mosaic_0001>

<llo_original>
// kernel: tpu_custom_call.1
$region0: #{tpu_custom_call.1}
  #allocation0 [shape = 'u32[]', space=smem, size = 0x4, offset = 0x4, fixed_abs, tag = 'smem constant byte address 0x4 - core index']
  #allocation1 [shape = 'u32[144,128]{1,0:T(1,128)}', space=vmem, size = 0x12000, scoped, tag = 'internal scratch']
  %s0 = inlined_call_operand.hbm [shape: f32[8,16,16], index: 0, kind: input, shape index: {}]
  %s1 = inlined_call_operand.vmem [shape: f32[8,8,8], index: 1, kind: input, shape index: {}]
  %s2 = inlined_call_operand.vmem [shape: f32[8,4,4], index: 2, kind: input, shape index: {}]
  %s3 = inlined_call_operand.vmem [shape: bf16[16,8], index: 3, kind: input, shape index: {}]
  %s4 = inlined_call_operand.vmem [shape: bf16[8,16], index: 4, kind: input, shape index: {}]
  %s5 = inlined_call_operand.vmem [shape: bf16[8,4], index: 5, kind: input, shape index: {}]
  %s6 = inlined_call_operand.vmem [shape: bf16[4,8], index: 6, kind: input, shape index: {}]
  %s7 = inlined_call_operand.hbm [shape: f32[8,16,16], index: 7, kind: output, shape index: {}]
  %s8 = sld [smem:[#allocation0]]
  $region65: #{tpu_custom_call.1} parent=0
    _
  %s10 = ssub.s32 1, %s8
  %s11 = scalar_select 0, %s10, %s8
  $region1: #{tpu_custom_call.1} parent=0
    #allocation2 [shape = 'u8[16384]{0}', space=vmem, size = 0x4000, scoped, tag = 'input window, operand 0']
    #allocation3 [shape = 's32[2]{0}', space=sflag, size = 0x8, scoped, tag = 'scoped memory for tpu_custom_call.1']
    #allocation4 [shape = 's32[2]{0}', space=sflag, size = 0x8, scoped, tag = 'scoped memory for tpu_custom_call.1']
    #allocation5 [shape = 'u8[16384]{0}', space=vmem, size = 0x4000, scoped, tag = 'output window, operand 0']
    %12 = vsyncpa [#allocation3], 0
    %s13 = scalar_lea.sflag [#allocation3], 1
    %14 = vsyncpa %s13, 0
    %15 = vsyncpa [#allocation4], 0
    %s16 = scalar_lea.sflag [#allocation4], 1
    %17 = vsyncpa %s16, 0
    loop: start=0, step=1, limit=10
    $region2: #{tpu_custom_call.1} parent=1 // loop_pre_header
      _
    $region3: #{tpu_custom_call.1} parent=1 // loop_header
      %s19 = sphi 0, %s23
      %p20 = scmp.ge.s32.totalorder %s19, 10
      %s29 = sphi 0, %s31
      %s32 = sphi 0, %s29
      %s33 = sphi 0, %s32
      %s49 = sphi 0, %s33
      %s55 = sphi 0, %s57
      %s58 = sphi 0, %s55
      %s59 = sphi 0, %s58
      %s75 = sphi 0, %s59
      %s81 = sphi 0, %s83
      %s84 = sphi 0, %s81
      %s85 = sphi 0, %s84
      %s101 = sphi 0, %s85
      %s105 = sphi 0, %s105
      %s107 = sphi 0, %s105
      %s108 = sphi 0, %s107
      %s122 = sphi 0, %s108
      %s126 = sphi 0, %s126
      %s128 = sphi 0, %s126
      %s129 = sphi 0, %s128
      %s143 = sphi 0, %s129
      %s147 = sphi 0, %s147
      %s149 = sphi 0, %s147
      %s150 = sphi 0, %s149
      %s164 = sphi 0, %s150
      %s168 = sphi 0, %s168
      %s170 = sphi 0, %s168
      %s171 = sphi 0, %s170
      %s185 = sphi 0, %s171
      %s191 = sphi 0, %s193
      %s194 = sphi 0, %s191
      %s195 = sphi 0, %s194
      %s211 = sphi 0, %s195
    $region4: #{tpu_custom_call.1} parent=1 // loop_header_branch
      %22 = sbr.rel (%p20) target = $region8
    $region5: #{tpu_custom_call.1} parent=1 // loop_body
      %s24 = ssub.s32 %s19, 1
      %s25 = ssub.s32 %s19, 2
      %s26 = sadd.s32 %s19, 1
      %s27 = ssub.s32 %s19, %s26
      %p28 = scmp.eq.s32.totalorder %s27, 0
      %s30 = sadd.s32 %s29, 1
      %s31 = scalar_select %p28, %s29, %s30
      %p34 = pneg %p28
      %p35 = scmp.eq.s32.totalorder %s19, 7
      %p36 = por %p34, %p35
      %p37 = scmp.ne.s32.totalorder %s29, %s32
      %p38 = scmp.eq.s32.totalorder %s19, 0
      %p39 = por %p37, %p38
      %p40 = scmp.ne.s32.totalorder %s29, %s32
      %p41 = scmp.eq.s32.totalorder %s24, 7
      %p42 = por %p40, %p41
      %p43 = scmp.ne.s32.totalorder %s32, %s33
      %p44 = scmp.eq.s32.totalorder %s24, 0
      %p45 = por %p43, %p44
      %p46 = scmp.ne.s32.totalorder %s32, %s33
      %p47 = scmp.eq.s32.totalorder %s25, 7
      %p48 = por %p46, %p47
      %p50 = scmp.ne.s32.totalorder %s33, %s49
      %p51 = scmp.eq.s32.totalorder %s25, 0
      %p52 = por %p50, %p51
      %s53 = ssub.s32 %s19, %s26
      %p54 = scmp.eq.s32.totalorder %s53, 0
      %s56 = sadd.s32 %s55, 1
      %s57 = scalar_select %p54, %s55, %s56
      %p60 = pneg %p54
      %p61 = scmp.eq.s32.totalorder %s19, 7
      %p62 = por %p60, %p61
      %p63 = scmp.ne.s32.totalorder %s55, %s58
      %p64 = scmp.eq.s32.totalorder %s19, 0
      %p65 = por %p63, %p64
      %p66 = scmp.ne.s32.totalorder %s55, %s58
      %p67 = scmp.eq.s32.totalorder %s24, 7
      %p68 = por %p66, %p67
      %p69 = scmp.ne.s32.totalorder %s58, %s59
      %p70 = scmp.eq.s32.totalorder %s24, 0
      %p71 = por %p69, %p70
      %p72 = scmp.ne.s32.totalorder %s58, %s59
      %p73 = scmp.eq.s32.totalorder %s25, 7
      %p74 = por %p72, %p73
      %p76 = scmp.ne.s32.totalorder %s59, %s75
      %p77 = scmp.eq.s32.totalorder %s25, 0
      %p78 = por %p76, %p77
      %s79 = ssub.s32 %s19, %s26
      %p80 = scmp.eq.s32.totalorder %s79, 0
      %s82 = sadd.s32 %s81, 1
      %s83 = scalar_select %p80, %s81, %s82
      %p86 = pneg %p80
      %p87 = scmp.eq.s32.totalorder %s19, 7
      %p88 = por %p86, %p87
      %p89 = scmp.ne.s32.totalorder %s81, %s84
      %p90 = scmp.eq.s32.totalorder %s19, 0
      %p91 = por %p89, %p90
      %p92 = scmp.ne.s32.totalorder %s81, %s84
      %p93 = scmp.eq.s32.totalorder %s24, 7
      %p94 = por %p92, %p93
      %p95 = scmp.ne.s32.totalorder %s84, %s85
      %p96 = scmp.eq.s32.totalorder %s24, 0
      %p97 = por %p95, %p96
      %p98 = scmp.ne.s32.totalorder %s84, %s85
      %p99 = scmp.eq.s32.totalorder %s25, 7
      %p100 = por %p98, %p99
      %p102 = scmp.ne.s32.totalorder %s85, %s101
      %p103 = scmp.eq.s32.totalorder %s25, 0
      %p104 = por %p102, %p103
      %s106 = sadd.s32 %s105, 1
      %p109 = scmp.eq.s32.totalorder %s19, 7
      %p110 = scmp.ne.s32.totalorder %s105, %s107
      %p111 = scmp.eq.s32.totalorder %s19, 0
      %p112 = por %p110, %p111
      %p113 = scmp.ne.s32.totalorder %s105, %s107
      %p114 = scmp.eq.s32.totalorder %s24, 7
      %p115 = por %p113, %p114
      %p116 = scmp.ne.s32.totalorder %s107, %s108
      %p117 = scmp.eq.s32.totalorder %s24, 0
      %p118 = por %p116, %p117
      %p119 = scmp.ne.s32.totalorder %s107, %s108
      %p120 = scmp.eq.s32.totalorder %s25, 7
      %p121 = por %p119, %p120
      %p123 = scmp.ne.s32.totalorder %s108, %s122
      %p124 = scmp.eq.s32.totalorder %s25, 0
      %p125 = por %p123, %p124
      %s127 = sadd.s32 %s126, 1
      %p130 = scmp.eq.s32.totalorder %s19, 7
      %p131 = scmp.ne.s32.totalorder %s126, %s128
      %p132 = scmp.eq.s32.totalorder %s19, 0
      %p133 = por %p131, %p132
      %p134 = scmp.ne.s32.totalorder %s126, %s128
      %p135 = scmp.eq.s32.totalorder %s24, 7
      %p136 = por %p134, %p135
      %p137 = scmp.ne.s32.totalorder %s128, %s129
      %p138 = scmp.eq.s32.totalorder %s24, 0
      %p139 = por %p137, %p138
      %p140 = scmp.ne.s32.totalorder %s128, %s129
      %p141 = scmp.eq.s32.totalorder %s25, 7
      %p142 = por %p140, %p141
      %p144 = scmp.ne.s32.totalorder %s129, %s143
      %p145 = scmp.eq.s32.totalorder %s25, 0
      %p146 = por %p144, %p145
      %s148 = sadd.s32 %s147, 1
      %p151 = scmp.eq.s32.totalorder %s19, 7
      %p152 = scmp.ne.s32.totalorder %s147, %s149
      %p153 = scmp.eq.s32.totalorder %s19, 0
      %p154 = por %p152, %p153
      %p155 = scmp.ne.s32.totalorder %s147, %s149
      %p156 = scmp.eq.s32.totalorder %s24, 7
      %p157 = por %p155, %p156
      %p158 = scmp.ne.s32.totalorder %s149, %s150
      %p159 = scmp.eq.s32.totalorder %s24, 0
      %p160 = por %p158, %p159
      %p161 = scmp.ne.s32.totalorder %s149, %s150
      %p162 = scmp.eq.s32.totalorder %s25, 7
      %p163 = por %p161, %p162
      %p165 = scmp.ne.s32.totalorder %s150, %s164
      %p166 = scmp.eq.s32.totalorder %s25, 0
      %p167 = por %p165, %p166
      %s169 = sadd.s32 %s168, 1
      %p172 = scmp.eq.s32.totalorder %s19, 7
      %p173 = scmp.ne.s32.totalorder %s168, %s170
      %p174 = scmp.eq.s32.totalorder %s19, 0
      %p175 = por %p173, %p174
      %p176 = scmp.ne.s32.totalorder %s168, %s170
      %p177 = scmp.eq.s32.totalorder %s24, 7
      %p178 = por %p176, %p177
      %p179 = scmp.ne.s32.totalorder %s170, %s171
      %p180 = scmp.eq.s32.totalorder %s24, 0
      %p181 = por %p179, %p180
      %p182 = scmp.ne.s32.totalorder %s170, %s171
      %p183 = scmp.eq.s32.totalorder %s25, 7
      %p184 = por %p182, %p183
      %p186 = scmp.ne.s32.totalorder %s171, %s185
      %p187 = scmp.eq.s32.totalorder %s25, 0
      %p188 = por %p186, %p187
      %s189 = ssub.s32 %s19, %s26
      %p190 = scmp.eq.s32.totalorder %s189, 0
      %s192 = sadd.s32 %s191, 1
      %s193 = scalar_select %p190, %s191, %s192
      %p196 = pneg %p190
      %p197 = scmp.eq.s32.totalorder %s19, 7
      %p198 = por %p196, %p197
      %p199 = scmp.ne.s32.totalorder %s191, %s194
      %p200 = scmp.eq.s32.totalorder %s19, 0
      %p201 = por %p199, %p200
      %p202 = scmp.ne.s32.totalorder %s191, %s194
      %p203 = scmp.eq.s32.totalorder %s24, 7
      %p204 = por %p202, %p203
      %p205 = scmp.ne.s32.totalorder %s194, %s195
      %p206 = scmp.eq.s32.totalorder %s24, 0
      %p207 = por %p205, %p206
      %p208 = scmp.ne.s32.totalorder %s194, %s195
      %p209 = scmp.eq.s32.totalorder %s25, 7
      %p210 = por %p208, %p209
      %p212 = scmp.ne.s32.totalorder %s195, %s211
      %p213 = scmp.eq.s32.totalorder %s25, 0
      %p214 = por %p212, %p213
      %p215 = scmp.le.s32.totalorder 1, %s19
      %p216 = scmp.lt.s32.totalorder %s19, 9
      %p217 = pnand %p215, %p216
      %p218 = pneg %p217
      // Predicated region
      $region9: #{tpu_custom_call.1} parent=5 // pred_check
        _
      $region10: #{tpu_custom_call.1} parent=5 // pred_check_branch
        %220 = sbr.rel (%p217) target = $region12
      $region11: #{tpu_custom_call.1} parent=5 // pred_region
        %s221 = ssub.s32 %s19, 1
        // Predicated region
        $region13: #{tpu_custom_call.1} parent=11 // pred_check
          %p222 = pneg %p118
        $region14: #{tpu_custom_call.1} parent=11 // pred_check_branch
          %224 = sbr.rel (%p222) target = $region16
        $region15: #{tpu_custom_call.1} parent=11 // pred_region
          _
        $region16: #{tpu_custom_call.1} parent=11 // pred_fallthru
          _
        // Predicated region
        $region17: #{tpu_custom_call.1} parent=11 // pred_check
          %p225 = pneg %p139
        $region18: #{tpu_custom_call.1} parent=11 // pred_check_branch
          %227 = sbr.rel (%p225) target = $region20
        $region19: #{tpu_custom_call.1} parent=11 // pred_region
          _
        $region20: #{tpu_custom_call.1} parent=11 // pred_fallthru
          _
        // Predicated region
        $region21: #{tpu_custom_call.1} parent=11 // pred_check
          %p228 = pneg %p160
        $region22: #{tpu_custom_call.1} parent=11 // pred_check_branch
          %230 = sbr.rel (%p228) target = $region24
        $region23: #{tpu_custom_call.1} parent=11 // pred_region
          _
        $region24: #{tpu_custom_call.1} parent=11 // pred_fallthru
          _
        // Predicated region
        $region25: #{tpu_custom_call.1} parent=11 // pred_check
          %p231 = pneg %p181
        $region26: #{tpu_custom_call.1} parent=11 // pred_check_branch
          %233 = sbr.rel (%p231) target = $region28
        $region27: #{tpu_custom_call.1} parent=11 // pred_region
          _
        $region28: #{tpu_custom_call.1} parent=11 // pred_fallthru
          _
      $region12: #{tpu_custom_call.1} parent=5 // pred_fallthru
        _
      %p234 = scmp.lt.s32.totalorder %s19, 8
      // Predicated region
      $region29: #{tpu_custom_call.1} parent=5 // pred_check
        %p235 = pneg %p234
      $region30: #{tpu_custom_call.1} parent=5 // pred_check_branch
        %237 = sbr.rel (%p235) target = $region32
      $region31: #{tpu_custom_call.1} parent=5 // pred_region
        // Predicated region
        $region33: #{tpu_custom_call.1} parent=31 // pred_check
          %p238 = pneg %p39
        $region34: #{tpu_custom_call.1} parent=31 // pred_check_branch
          %240 = sbr.rel (%p238) target = $region36
        $region35: #{tpu_custom_call.1} parent=31 // pred_region
          %s241 = sand.u32 %s29, 1
          %s242 = scalar_lea.sflag [#allocation3], %s241
          %s243 = sand.u32 %s29, 1
          %s244 = smul.addr %s243, 16
          %s245 = scalar_lea.vmem [#allocation2], %s244
          %s247 = ssub.s32 256, 256
          %248 = vsyncadd %s242, %s247
          %s249 = smul.addr %s19, 2
          %s250 = smul.addr %s249, 128
          %s251 = scalar_lea.hbm %s0, %s250
          %s252 = sshll.u32 %s245, 4
          %s253 = int_to_ptr.vmem [resolvable:$true] %s252
          %258 = dma.hbm_to_vmem [thread:$0]  %s251, 256, %s253, %s242, 128, 128, 8
        $region36: #{tpu_custom_call.1} parent=31 // pred_fallthru
          _
        // Predicated region
        $region37: #{tpu_custom_call.1} parent=31 // pred_check
          %p259 = pneg %p65
        $region38: #{tpu_custom_call.1} parent=31 // pred_check_branch
          %261 = sbr.rel (%p259) target = $region40
        $region39: #{tpu_custom_call.1} parent=31 // pred_region
          %p262 = scmp.lt.s32.totalorder %s19, 7
          %s263 = scalar_select %p262, %s19, 7
          %s264 = smul.addr %s263, 8
          %s265 = scalar_lea.vmem %s1, %s264
        $region40: #{tpu_custom_call.1} parent=31 // pred_fallthru
          _
        // Predicated region
        $region41: #{tpu_custom_call.1} parent=31 // pred_check
          %p266 = pneg %p91
        $region42: #{tpu_custom_call.1} parent=31 // pred_check_branch
          %268 = sbr.rel (%p266) target = $region44
        $region43: #{tpu_custom_call.1} parent=31 // pred_region
          %p269 = scmp.lt.s32.totalorder %s19, 7
          %s270 = scalar_select %p269, %s19, 7
          %s271 = smul.addr %s270, 4
          %s272 = scalar_lea.vmem %s2, %s271
        $region44: #{tpu_custom_call.1} parent=31 // pred_fallthru
          _
      $region32: #{tpu_custom_call.1} parent=5 // pred_fallthru
        _
      %p273 = scmp.le.s32.totalorder 1, %s19
      %p274 = scmp.lt.s32.totalorder %s19, 9
      %p275 = pnand %p273, %p274
      %p276 = pneg %p275
      // Predicated region
      $region45: #{tpu_custom_call.1} parent=5 // pred_check
        _
      $region46: #{tpu_custom_call.1} parent=5 // pred_check_branch
        %278 = sbr.rel (%p275) target = $region48
      $region47: #{tpu_custom_call.1} parent=5 // pred_region
        %s279 = ssub.s32 %s19, 1
        %s280 = sand.u32 %s32, 1
        %s281 = scalar_lea.sflag [#allocation3], %s280
        %s282 = sand.u32 %s32, 1
        %s283 = smul.addr %s282, 16
        %s284 = scalar_lea.vmem [#allocation2], %s283
        // Predicated region
        $region49: #{tpu_custom_call.1} parent=47 // pred_check
          %p285 = pneg %p45
        $region50: #{tpu_custom_call.1} parent=47 // pred_check_branch
          %287 = sbr.rel (%p285) target = $region52
        $region51: #{tpu_custom_call.1} parent=47 // pred_region
          %288 = dma.done %s281, 256
        $region52: #{tpu_custom_call.1} parent=47 // pred_fallthru
          _
        %s289 = sand.u32 %s32, 1
        %s290 = scalar_lea.sflag [#allocation3], %s289
        %s291 = sand.u32 %s32, 1
        %s292 = smul.addr %s291, 16
        %s293 = scalar_lea.vmem [#allocation2], %s292
        %p294 = pneg %p45
        %p295 = pneg %p42
        %p296 = scmp.lt.s32.totalorder %s24, 7
        %s297 = scalar_select %p296, %s24, 7
        %s298 = smul.addr %s297, 8
        %s299 = scalar_lea.vmem %s1, %s298
        %p300 = pneg %p71
        %p301 = pneg %p68
        %p302 = scmp.lt.s32.totalorder %s24, 7
        %s303 = scalar_select %p302, %s24, 7
        %s304 = smul.addr %s303, 4
        %s305 = scalar_lea.vmem %s2, %s304
        %p306 = pneg %p97
        %p307 = pneg %p94
        %p308 = pneg %p118
        %p309 = pneg %p115
        %p310 = pneg %p139
        %p311 = pneg %p136
        %p312 = pneg %p160
        %p313 = pneg %p157
        %p314 = pneg %p181
        %p315 = pneg %p178
        %p316 = pneg %p207
        %p317 = pneg %p204
        %s318 = sand.u32 %s194, 1
        %s319 = scalar_lea.sflag [#allocation4], %s318
        %s320 = sand.u32 %s194, 1
        %s321 = smul.addr %s320, 16
        %s322 = scalar_lea.vmem [#allocation5], %s321
        %p323 = scmp.lt.s32.totalorder %s24, 7
        %s324 = scalar_select %p323, %s24, 7
        %s325 = smul.addr %s324, 8
        %s326 = scalar_lea.vmem %s1, %s325
        %p327 = scmp.lt.s32.totalorder %s24, 7
        %s328 = scalar_select %p327, %s24, 7
        %s329 = smul.addr %s328, 4
        %s330 = scalar_lea.vmem %s2, %s329
        %v332 = vld [vmem:[%s330] sm:$0xf]
        %v333 = vld [vmem:[%s5] sm:$0xf]
        %v334 = vld [vmem:[%s6] sm:$0x3]
        %v335 = vpack.c.bf16 %v332, %v332
        %vm336 = vcmask 31744
        %v338 = vsel %vm336, %v333, 0
        %vm340 = vcmask 1041408
        %v342 = vsel %vm340, %v335, 0
        %344 = vmatprep.subr.bf16.mxu0 0
        %345 = vmatpush1.bf16.msra.mxu0 %v342
        %346 = vmatprep.subr.bf16.mxu0 0
        %347 = vmatpush1.bf16.msra.mxu0 0
        %348 = vmatprep.subr.bf16.mxu0 0
        %349 = vmatpush1.bf16.msra.mxu0 0
        %350 = vmatprep.subr.bf16.mxu0 0
        %351 = vmatpush1.bf16.msra.mxu0 0
        %352 = vmatprep.subr.bf16.mxu0 0
        %353 = vmatpush1.bf16.msra.mxu0 0
        %354 = vmatprep.subr.bf16.mxu0 0
        %355 = vmatpush1.bf16.msra.mxu0 0
        %356 = vmatprep.subr.bf16.mxu0 0
        %357 = vmatpush1.bf16.msra.mxu0 0
        %358 = vmatprep.subr.bf16.mxu0 0
        %359 = vmatpush1.bf16.msra.mxu0 0
        %360 = vmatprep.subr.bf16.mxu0 0
        %361 = vmatpush1.bf16.msra.mxu0 0
        %362 = vmatprep.subr.bf16.mxu0 0
        %363 = vmatpush1.bf16.msra.mxu0 0
        %364 = vmatprep.subr.bf16.mxu0 0
        %365 = vmatpush1.bf16.msra.mxu0 0
        %366 = vmatprep.subr.bf16.mxu0 0
        %367 = vmatpush1.bf16.msra.mxu0 0
        %368 = vmatprep.subr.bf16.mxu0 0
        %369 = vmatpush1.bf16.msra.mxu0 0
        %370 = vmatprep.subr.bf16.mxu0 0
        %371 = vmatpush1.bf16.msra.mxu0 0
        %372 = vmatprep.subr.bf16.mxu0 0
        %373 = vmatpush1.bf16.msra.mxu0 0
        %374 = vmatprep.subr.bf16.mxu0 0
        %375 = vmatpush1.bf16.msra.mxu0 0
        %376 = vmatprep.mubr.bf16.mxu0 0
        %377 = vmatmul.mubr.bf16.gmra.mrb[0].mxu0 %v338
        %v378 = vpop.f32.mrb[0].mxu0
        %v379 = vadd.f32 0.0, %v378
        %v380 = vpop.f32.mrb[0].mxu0
        %v381 = vpop.f32.mrb[0].mxu0
        %v382 = vpop.f32.mrb[0].mxu0
        %383 = vdwg.mxu0
        %v384 = vld [vmem:[%s326] sm:$0xff]
        %v385 = vpack.c.bf16 %v379, %v379
        %v387 = vsel %vm336, %v385, 0
        %v390 = vsel %vm340, %v334, 0
        %392 = vmatprep.subr.bf16.mxu0 0
        %393 = vmatpush1.bf16.msra.mxu0 %v390
        %394 = vmatprep.subr.bf16.mxu0 0
        %395 = vmatpush1.bf16.msra.mxu0 0
        %396 = vmatprep.subr.bf16.mxu0 0
        %397 = vmatpush1.bf16.msra.mxu0 0
        %398 = vmatprep.subr.bf16.mxu0 0
        %399 = vmatpush1.bf16.msra.mxu0 0
        %400 = vmatprep.subr.bf16.mxu0 0
        %401 = vmatpush1.bf16.msra.mxu0 0
        %402 = vmatprep.subr.bf16.mxu0 0
        %403 = vmatpush1.bf16.msra.mxu0 0
        %404 = vmatprep.subr.bf16.mxu0 0
        %405 = vmatpush1.bf16.msra.mxu0 0
        %406 = vmatprep.subr.bf16.mxu0 0
        %407 = vmatpush1.bf16.msra.mxu0 0
        %408 = vmatprep.subr.bf16.mxu0 0
        %409 = vmatpush1.bf16.msra.mxu0 0
        %410 = vmatprep.subr.bf16.mxu0 0
        %411 = vmatpush1.bf16.msra.mxu0 0
        %412 = vmatprep.subr.bf16.mxu0 0
        %413 = vmatpush1.bf16.msra.mxu0 0
        %414 = vmatprep.subr.bf16.mxu0 0
        %415 = vmatpush1.bf16.msra.mxu0 0
        %416 = vmatprep.subr.bf16.mxu0 0
        %417 = vmatpush1.bf16.msra.mxu0 0
        %418 = vmatprep.subr.bf16.mxu0 0
        %419 = vmatpush1.bf16.msra.mxu0 0
        %420 = vmatprep.subr.bf16.mxu0 0
        %421 = vmatpush1.bf16.msra.mxu0 0
        %422 = vmatprep.subr.bf16.mxu0 0
        %423 = vmatpush1.bf16.msra.mxu0 0
        %424 = vmatprep.mubr.bf16.mxu0 0
        %425 = vmatmul.mubr.bf16.gmra.mrb[0].mxu0 %v387
        %v426 = vpop.f32.mrb[0].mxu0
        %v427 = vadd.f32 0.0, %v426
        %v428 = vpop.f32.mrb[0].mxu0
        %v429 = vpop.f32.mrb[0].mxu0
        %v430 = vpop.f32.mrb[0].mxu0
        %431 = vdwg.mxu0
        %v432 = vadd.f32 %v384, %v427
        %v433 = vld [vmem:[%s3] sm:$0xf]
        %v434 = vld [vmem:[%s3 + $0x4] sm:$0xf]
        %v435 = vld [vmem:[%s4] sm:$0xf]
        %v436 = vpack.c.bf16 %v432, %v432
        %v439 = vunpack.c.l.b16 %v433
        %v440 = vunpack.c.l.b16 %v434
        %v441 = vpack.c.b16 %v440, %v439
        %vm442 = vcmask 64512
        %v444 = vsel %vm442, %v441, 0
        %vm446 = vcmask 1043456
        %v448 = vsel %vm446, %v436, 0
        %450 = vmatprep.subr.bf16.mxu0 0
        %451 = vmatpush1.bf16.msra.mxu0 %v448
        %452 = vmatprep.subr.bf16.mxu0 0
        %453 = vmatpush1.bf16.msra.mxu0 0
        %454 = vmatprep.subr.bf16.mxu0 0
        %455 = vmatpush1.bf16.msra.mxu0 0
        %456 = vmatprep.subr.bf16.mxu0 0
        %457 = vmatpush1.bf16.msra.mxu0 0
        %458 = vmatprep.subr.bf16.mxu0 0
        %459 = vmatpush1.bf16.msra.mxu0 0
        %460 = vmatprep.subr.bf16.mxu0 0
        %461 = vmatpush1.bf16.msra.mxu0 0
        %462 = vmatprep.subr.bf16.mxu0 0
        %463 = vmatpush1.bf16.msra.mxu0 0
        %464 = vmatprep.subr.bf16.mxu0 0
        %465 = vmatpush1.bf16.msra.mxu0 0
        %466 = vmatprep.subr.bf16.mxu0 0
        %467 = vmatpush1.bf16.msra.mxu0 0
        %468 = vmatprep.subr.bf16.mxu0 0
        %469 = vmatpush1.bf16.msra.mxu0 0
        %470 = vmatprep.subr.bf16.mxu0 0
        %471 = vmatpush1.bf16.msra.mxu0 0
        %472 = vmatprep.subr.bf16.mxu0 0
        %473 = vmatpush1.bf16.msra.mxu0 0
        %474 = vmatprep.subr.bf16.mxu0 0
        %475 = vmatpush1.bf16.msra.mxu0 0
        %476 = vmatprep.subr.bf16.mxu0 0
        %477 = vmatpush1.bf16.msra.mxu0 0
        %478 = vmatprep.subr.bf16.mxu0 0
        %479 = vmatpush1.bf16.msra.mxu0 0
        %480 = vmatprep.subr.bf16.mxu0 0
        %481 = vmatpush1.bf16.msra.mxu0 0
        %482 = vmatprep.mubr.bf16.mxu0 0
        %483 = vmatmul.mubr.bf16.gmra.mrb[0].mxu0 %v444
        %v484 = vpop.f32.mrb[0].mxu0
        %v485 = vadd.f32 0.0, %v484
        %v486 = vpop.f32.mrb[0].mxu0
        %v487 = vpop.f32.mrb[0].mxu0
        %v488 = vadd.f32 0.0, %v487
        %v489 = vpop.f32.mrb[0].mxu0
        %490 = vdwg.mxu0
        %v491 = vld [vmem:[%s284] sm:$0xff]
        %v492 = vld [vmem:[%s284 + $0x8] sm:$0xff]
        %v493 = vpack.c.bf16 %v488, %v485
        %v495 = vsel %vm442, %v493, 0
        %v498 = vsel %vm446, %v435, 0
        %500 = vmatprep.subr.bf16.mxu0 0
        %501 = vmatpush1.bf16.msra.mxu0 %v498
        %502 = vmatprep.subr.bf16.mxu0 0
        %503 = vmatpush1.bf16.msra.mxu0 0
        %504 = vmatprep.subr.bf16.mxu0 0
        %505 = vmatpush1.bf16.msra.mxu0 0
        %506 = vmatprep.subr.bf16.mxu0 0
        %507 = vmatpush1.bf16.msra.mxu0 0
        %508 = vmatprep.subr.bf16.mxu0 0
        %509 = vmatpush1.bf16.msra.mxu0 0
        %510 = vmatprep.subr.bf16.mxu0 0
        %511 = vmatpush1.bf16.msra.mxu0 0
        %512 = vmatprep.subr.bf16.mxu0 0
        %513 = vmatpush1.bf16.msra.mxu0 0
        %514 = vmatprep.subr.bf16.mxu0 0
        %515 = vmatpush1.bf16.msra.mxu0 0
        %516 = vmatprep.subr.bf16.mxu0 0
        %517 = vmatpush1.bf16.msra.mxu0 0
        %518 = vmatprep.subr.bf16.mxu0 0
        %519 = vmatpush1.bf16.msra.mxu0 0
        %520 = vmatprep.subr.bf16.mxu0 0
        %521 = vmatpush1.bf16.msra.mxu0 0
        %522 = vmatprep.subr.bf16.mxu0 0
        %523 = vmatpush1.bf16.msra.mxu0 0
        %524 = vmatprep.subr.bf16.mxu0 0
        %525 = vmatpush1.bf16.msra.mxu0 0
        %526 = vmatprep.subr.bf16.mxu0 0
        %527 = vmatpush1.bf16.msra.mxu0 0
        %528 = vmatprep.subr.bf16.mxu0 0
        %529 = vmatpush1.bf16.msra.mxu0 0
        %530 = vmatprep.subr.bf16.mxu0 0
        %531 = vmatpush1.bf16.msra.mxu0 0
        %532 = vmatprep.mubr.bf16.mxu0 0
        %533 = vmatmul.mubr.bf16.gmra.mrb[0].mxu0 %v495
        %v534 = vpop.f32.mrb[0].mxu0
        %v535 = vadd.f32 0.0, %v534
        %v536 = vpop.f32.mrb[0].mxu0
        %v537 = vpop.f32.mrb[0].mxu0
        %v538 = vadd.f32 0.0, %v537
        %v539 = vpop.f32.mrb[0].mxu0
        %540 = vdwg.mxu0
        %v541 = vadd.f32 %v491, %v535
        %v542 = vadd.f32 %v492, %v538
        %vm543 = vcmask 130048
        %544 = vst.msk [vmem:[%s322] sm:$0xff] %vm543, %v541
        %545 = vst.msk [vmem:[%s322 + $0x8] sm:$0xff] %vm543, %v542
        %s546 = sand.u32 %s194, 1
        %s547 = scalar_lea.sflag [#allocation4], %s546
        %s548 = sand.u32 %s194, 1
        %s549 = smul.addr %s548, 16
        %s550 = scalar_lea.vmem [#allocation5], %s549
        // Predicated region
        $region53: #{tpu_custom_call.1} parent=47 // pred_check
          %p551 = pneg %p204
        $region54: #{tpu_custom_call.1} parent=47 // pred_check_branch
          %553 = sbr.rel (%p551) target = $region56
        $region55: #{tpu_custom_call.1} parent=47 // pred_region
          %s555 = ssub.s32 256, 256
          %556 = vsyncadd %s547, %s555
          %s557 = smul.addr %s24, 2
          %s558 = smul.addr %s557, 128
          %s559 = scalar_lea.hbm %s7, %s558
          %s560 = sshll.u32 %s550, 4
          %s561 = int_to_ptr.vmem [resolvable:$true] %s560
          %566 = dma.vmem_to_hbm [thread:$0]  %s561, 256, %s559, %s547, 128, 128, 8
        $region56: #{tpu_custom_call.1} parent=47 // pred_fallthru
          _
      $region48: #{tpu_custom_call.1} parent=5 // pred_fallthru
        _
      %p567 = scmp.le.s32.totalorder 2, %s19
      // Predicated region
      $region57: #{tpu_custom_call.1} parent=5 // pred_check
        %p568 = pneg %p567
      $region58: #{tpu_custom_call.1} parent=5 // pred_check_branch
        %570 = sbr.rel (%p568) target = $region60
      $region59: #{tpu_custom_call.1} parent=5 // pred_region
        %s571 = ssub.s32 %s19, 2
        // Predicated region
        $region61: #{tpu_custom_call.1} parent=59 // pred_check
          %p572 = pneg %p210
        $region62: #{tpu_custom_call.1} parent=59 // pred_check_branch
          %574 = sbr.rel (%p572) target = $region64
        $region63: #{tpu_custom_call.1} parent=59 // pred_region
          %s575 = sand.u32 %s195, 1
          %s576 = scalar_lea.sflag [#allocation4], %s575
          %s577 = sand.u32 %s195, 1
          %s578 = smul.addr %s577, 16
          %s579 = scalar_lea.vmem [#allocation5], %s578
          %580 = dma.done %s576, 256
        $region64: #{tpu_custom_call.1} parent=59 // pred_fallthru
          _
      $region60: #{tpu_custom_call.1} parent=5 // pred_fallthru
        _
    $region6: #{tpu_custom_call.1} parent=1 // loop_footer
      %s23 = sadd.s32 1, %s19
    $region7: #{tpu_custom_call.1} parent=1 // loop_footer_branch
      %18 = sbr.rel target = $region3
    $region8: #{tpu_custom_call.1} parent=1 // loop_exit
      _
    %581 = vsyncpa [#allocation3], 1
    %s582 = scalar_lea.sflag [#allocation3], 1
    %583 = vsyncpa %s582, 1
    %584 = vsyncpa [#allocation4], 1
    %s585 = scalar_lea.sflag [#allocation4], 1
    %586 = vsyncpa %s585, 1

</llo_original>
